<compile_context>
chip_gen: v7x
topology: tpu7x:2x2x1
jax: 0.10.0
libtpu: 0.0.40
codegen_flags: <defaults>
</compile_context>

<pallas_src>
import functools

import jax
import jax.numpy as jnp
from jax import lax
from jax.experimental import pallas as pl
from jax.experimental.pallas import tpu as pltpu


def _lsa_softmax_kernel(p_ref, x_ref, o_ref, *, axis):
    """One (tb, h, w) block: greedy one-hot assignment + closed-form softmax.

    p_ref: SMEM (2,) float32 = [p_hot, p_cold] (precomputed, data independent)
    axis:  block-local softmax/assignment axis (1 -> over h, 2 -> over w)
    """
    # TODO(synk): exact Hungarian linear_sum_assignment is a sequential,
    # data-dependent algorithm with no clean Pallas equivalent; a greedy
    # per-line argmax one-hot (maximize=True) stands in for it.
    x = x_ref[...]
    n = x.shape[axis]
    m = jnp.max(x, axis=axis, keepdims=True)
    iota = lax.broadcasted_iota(jnp.int32, x.shape, axis)
    # First index attaining the per-line max (matches argmax tie-breaking).
    idx = jnp.min(jnp.where(x == m, iota, jnp.int32(n)), axis=axis, keepdims=True)
    # Single vectorized full-tile store: hot positions get p_hot, rest p_cold.
    o_ref[...] = jnp.where(iota == idx, p_ref[0], p_ref[1])


def _tpu_generation_params():
    """Returns (physical VMEM bytes per TensorCore, TensorCores per chip)."""
    kind = ""
    try:
        kind = jax.devices()[0].device_kind.lower()
    except Exception:
        pass
    is_v7 = "v7" in kind
    vmem_bytes = (64 if is_v7 else 128) * 1024 * 1024
    try:  # prefer the authoritative query when available
        vmem_bytes = int(pltpu.get_tpu_info().vmem_capacity_bytes)
    except Exception:
        pass
    cores = 2 if is_v7 else 1
    return vmem_bytes, cores


def _tiling(B, h, w):
    """Pick the batch-tile size and scoped-VMEM limit for (tb, h, w) blocks."""
    vmem_bytes, cores = _tpu_generation_params()
    vmem_limit = (3 * vmem_bytes) // 4           # leave headroom for temporaries
    # in + out blocks, each double-buffered by the BlockSpec pipeline:
    per_batch = 2 * 2 * h * w * 4
    budget = vmem_limit // 2
    tb = int(max(1, min(B, budget // per_batch)))
    # TODO(synk): for very large h*w (a tb=1 block no longer fits VMEM) the
    # non-softmax spatial axis would need a second grid dimension.
    if cores >= 2 and B >= 2:
        # v7x: keep >= `cores` grid steps so the "parallel" axis shards across
        # both TensorCores; on v5e/v6e (1 TC) we keep one maximal tile.
        tb = min(tb, pl.cdiv(B, cores))
    return tb, int(vmem_limit)


def my_lsa_model_forward(x, scale, bias):
    """x: (B, h, w) f32, scale: (1,) f32, bias: (1,) f32 -> (B, h, w) f32."""
    B, h, w = x.shape
    axis = 1 if w < h else 2                     # torch softmax dim
    n = x.shape[axis]
    x = x.astype(jnp.float32)

    # Closed-form softmax of a one-hot line {scale (hot), 0 (cold)}: two
    # data-independent scalars computed once, with exact division (no
    # approximate reciprocal).  `bias` cancels by softmax shift-invariance and
    # nan_to_num is a no-op on the {0,1} one-hot assignment, so neither is
    # needed in the kernel (kept in the signature for nn.Module parity).
    del bias
    s = scale.reshape(()).astype(jnp.float32)
    e = jnp.exp(s)
    denom = e + jnp.float32(n - 1)
    p = jnp.stack([e / denom, 1.0 / denom])      # (2,) = [p_hot, p_cold]

    tb, vmem_limit = _tiling(B, h, w)
    kernel = functools.partial(_lsa_softmax_kernel, axis=axis)
    return pl.pallas_call(
        kernel,
        out_shape=jax.ShapeDtypeStruct((B, h, w), jnp.float32),
        grid=(pl.cdiv(B, tb),),
        in_specs=[
            pl.BlockSpec(memory_space=pltpu.MemorySpace.SMEM),   # p (2,) scalars
            pl.BlockSpec((tb, h, w), lambda b: (b, 0, 0)),       # x batch tile
        ],
        out_specs=pl.BlockSpec((tb, h, w), lambda b: (b, 0, 0)),
        compiler_params=pltpu.CompilerParams(
            dimension_semantics=("parallel",),
            vmem_limit_bytes=vmem_limit,
        ),
    )(p, x)


def _reference_forward(x, scale, bias):
    """Pure-JAX reference mirroring the kernel's greedy-LSA approximation."""
    B, h, w = x.shape
    ax = 1 if w < h else 2
    idx = jnp.argmax(x, axis=ax, keepdims=True)
    iota = lax.broadcasted_iota(jnp.int32, x.shape, ax)
    assign = (iota == idx).astype(jnp.float32)
    out = jnp.nan_to_num(assign) * scale.reshape(()) + bias.reshape(())
    return jax.nn.softmax(out, axis=ax)


if __name__ == "__main__":
    # Deterministic parameter init matching the module's __init__:
    #   bias = zeros(1), scale = ones(1) * 10
    scale = jnp.ones((1,), dtype=jnp.float32) * 10.0
    bias = jnp.zeros((1,), dtype=jnp.float32)

    # Case 1: w < h  -> softmax over torch dim=1 (over h).
    B, h, w = 4, 16, 8
    x = jax.random.normal(jax.random.PRNGKey(0), (B, h, w), dtype=jnp.float32)
    out = jax.block_until_ready(my_lsa_model_forward(x, scale, bias))
    assert out.shape == (B, h, w), out.shape
    assert bool(jnp.allclose(jnp.sum(out, axis=1), 1.0, atol=1e-5))
    ref = _reference_forward(x, scale, bias)
    assert bool(jnp.allclose(out, ref, atol=1e-5, rtol=1e-5)), float(
        jnp.max(jnp.abs(out - ref)))

    # Case 2: w >= h -> softmax over torch dim=2 (over w).
    B2, h2, w2 = 4, 8, 16
    x2 = jax.random.normal(jax.random.PRNGKey(1), (B2, h2, w2), dtype=jnp.float32)
    out2 = jax.block_until_ready(my_lsa_model_forward(x2, scale, bias))
    assert out2.shape == (B2, h2, w2), out2.shape
    assert bool(jnp.allclose(jnp.sum(out2, axis=2), 1.0, atol=1e-5))
    ref2 = _reference_forward(x2, scale, bias)
    assert bool(jnp.allclose(out2, ref2, atol=1e-5, rtol=1e-5)), float(
        jnp.max(jnp.abs(out2 - ref2)))

    print("KERNEL_OK")
</pallas_src>

<mosaic_0001>
module attributes {stable_mosaic.version = 11 : i64} {
  func.func @_lsa_softmax_kernel(%arg0: i32, %arg1: memref<2xf32, #tpu.memory_space<smem>>, %arg2: memref<4x16x8xf32, #tpu.memory_space<vmem>>, %arg3: memref<4x16x8xf32, #tpu.memory_space<vmem>>) attributes {dimension_semantics = [#tpu.dimension_semantics<parallel>], iteration_bounds = array<i64: 1>, scalar_prefetch = 0 : i64, scratch_operands = 0 : i64, tpu.core_type = #tpu.core_type<tc>, window_params = [{transform_indices = @transform_0, window_bounds = array<i64: 2>}, {transform_indices = @transform_1, window_bounds = array<i64: 4, 16, 8>}, {transform_indices = @transform_2, window_bounds = array<i64: 4, 16, 8>}]} {
    %c0 = arith.constant 0 : index
    %c0_0 = arith.constant 0 : index
    %c0_1 = arith.constant 0 : index
    %0 = vector.load %arg2[%c0, %c0_0, %c0_1] : memref<4x16x8xf32, #tpu.memory_space<vmem>>, vector<4x16x8xf32>
    %cst = arith.constant dense<0xFF800000> : vector<4x8xf32>
    %1 = vector.multi_reduction <maximumf>, %0, %cst [1] : vector<4x16x8xf32> to vector<4x8xf32>
    %2 = vector.shape_cast %1 : vector<4x8xf32> to vector<4x1x8xf32>
    %3 = tpu.iota {dimensions = array<i32: 1>} : vector<4x16x8xi32>
    %4 = vector.broadcast %2 : vector<4x1x8xf32> to vector<4x16x8xf32>
    %5 = arith.cmpf oeq, %0, %4 : vector<4x16x8xf32>
    %c16_i32 = arith.constant 16 : i32
    %6 = vector.broadcast %c16_i32 : i32 to vector<4x16x8xi32>
    %7 = arith.select %5, %3, %6 : vector<4x16x8xi1>, vector<4x16x8xi32>
    %cst_2 = arith.constant dense<2147483647> : vector<4x8xi32>
    %8 = vector.multi_reduction <minsi>, %7, %cst_2 [1] : vector<4x16x8xi32> to vector<4x8xi32>
    %9 = vector.shape_cast %8 : vector<4x8xi32> to vector<4x1x8xi32>
    %10 = vector.broadcast %9 : vector<4x1x8xi32> to vector<4x16x8xi32>
    %11 = arith.cmpi eq, %3, %10 : vector<4x16x8xi32>
    %c0_3 = arith.constant 0 : index
    %12 = memref.load %arg1[%c0_3] : memref<2xf32, #tpu.memory_space<smem>>
    %c1 = arith.constant 1 : index
    %13 = memref.load %arg1[%c1] : memref<2xf32, #tpu.memory_space<smem>>
    %14 = vector.broadcast %12 : f32 to vector<4x16x8xf32>
    %15 = vector.broadcast %13 : f32 to vector<4x16x8xf32>
    %16 = arith.select %11, %14, %15 : vector<4x16x8xi1>, vector<4x16x8xf32>
    %c0_4 = arith.constant 0 : index
    %c0_5 = arith.constant 0 : index
    %c0_6 = arith.constant 0 : index
    %17 = vector.load %arg3[%c0_4, %c0_5, %c0_6] : memref<4x16x8xf32, #tpu.memory_space<vmem>>, vector<4x16x8xf32>
    tpu.vector_store %arg3[%c0_4, %c0_5, %c0_6], %16 {strides = array<i32>} : memref<4x16x8xf32, #tpu.memory_space<vmem>>, vector<4x16x8xf32>,
    return
  }
  func.func @transform_0(%arg0: i32) -> i32 {
    %c0_i32 = arith.constant 0 : i32
    %c0_i32_0 = arith.constant 0 : i32
    return %c0_i32 : i32
  }
  func.func @transform_1(%arg0: i32) -> (i32, i32, i32) {
    %c0_i32 = arith.constant 0 : i32
    %c0_i32_0 = arith.constant 0 : i32
    %c0_i32_1 = arith.constant 0 : i32
    return %arg0, %c0_i32, %c0_i32_0 : i32, i32, i32
  }
  func.func @transform_2(%arg0: i32) -> (i32, i32, i32) {
    %c0_i32 = arith.constant 0 : i32
    %c0_i32_0 = arith.constant 0 : i32
    %c0_i32_1 = arith.constant 0 : i32
    return %arg0, %c0_i32, %c0_i32_0 : i32, i32, i32
  }
}

</mosaic_0001>

<llo_original>
// kernel: tpu_custom_call.1
$region0: #{tpu_custom_call.1}
  #allocation0 [shape = 'u32[]', space=smem, size = 0x4, offset = 0x4, fixed_abs, tag = 'smem constant byte address 0x4 - core index']
  #allocation1 [shape = 'u32[144,128]{1,0:T(1,128)}', space=vmem, size = 0x12000, scoped, tag = 'internal scratch']
  %s0 = inlined_call_operand.hbm [shape: f32[2], index: 0, kind: input, shape index: {}]
  %s1 = inlined_call_operand.hbm [shape: f32[4,16,8], index: 1, kind: input, shape index: {}]
  %s2 = inlined_call_operand.hbm [shape: f32[4,16,8], index: 2, kind: output, shape index: {}]
  %s3 = sld [smem:[#allocation0]]
  $region26: #{tpu_custom_call.1} parent=0
    _
  %s5 = ssub.s32 1, %s3
  %s6 = scalar_select 0, %s5, %s3
  $region1: #{tpu_custom_call.1} parent=0
    #allocation2 [shape = 'u8[512]{0}', space=smem, size = 0x200, scoped, tag = 'input window, operand 0, single buffered']
    #allocation3 [shape = 's32[1]{0}', space=sflag, size = 0x4, scoped, tag = 'scoped memory for tpu_custom_call.1']
    #allocation4 [shape = 's32[1]{0}', space=sflag, size = 0x4, scoped, tag = 'scoped memory for tpu_custom_call.1']
    #allocation5 [shape = 's32[1]{0}', space=sflag, size = 0x4, scoped, tag = 'scoped memory for tpu_custom_call.1']
    #allocation6 [shape = 'u8[32768]{0}', space=vmem, size = 0x8000, scoped, tag = 'input window, operand 1, single buffered']
    #allocation7 [shape = 'u8[32768]{0}', space=vmem, size = 0x8000, scoped, tag = 'output window, operand 0, single buffered']
    %7 = vsyncpa [#allocation5], 0
    %8 = vsyncpa [#allocation3], 0
    %9 = vsyncpa [#allocation4], 0
    // Predicated region
    $region2: #{tpu_custom_call.1} parent=1 // pred_check
      _
    $region3: #{tpu_custom_call.1} parent=1 // pred_check_branch
      %11 = sbr.rel (0) target = $region5
    $region4: #{tpu_custom_call.1} parent=1 // pred_region
      %s13 = ssub.s32 16, 16
      %14 = vsyncadd [#allocation5], %s13
      %17 = dma.hbm_to_smem %s0, 16, [#allocation2], [#allocation5]
    $region5: #{tpu_custom_call.1} parent=1 // pred_fallthru
      _
    // Predicated region
    $region6: #{tpu_custom_call.1} parent=1 // pred_check
      _
    $region7: #{tpu_custom_call.1} parent=1 // pred_check_branch
      %19 = sbr.rel (0) target = $region9
    $region8: #{tpu_custom_call.1} parent=1 // pred_region
      %s21 = ssub.s32 1024, 1024
      %22 = vsyncadd [#allocation3], %s21
      %s23 = sshll.u32 [#allocation6], 4
      %s24 = int_to_ptr.vmem [resolvable:$true] %s23
      %29 = dma.hbm_to_vmem [thread:$0]  %s1, 1024, %s24, [#allocation3], 128, 128, 8
    $region9: #{tpu_custom_call.1} parent=1 // pred_fallthru
      _
    // Predicated region
    $region10: #{tpu_custom_call.1} parent=1 // pred_check
      _
    $region11: #{tpu_custom_call.1} parent=1 // pred_check_branch
      %31 = sbr.rel (0) target = $region13
    $region12: #{tpu_custom_call.1} parent=1 // pred_region
      %32 = dma.done [#allocation5], 16
    $region13: #{tpu_custom_call.1} parent=1 // pred_fallthru
      _
    // Predicated region
    $region14: #{tpu_custom_call.1} parent=1 // pred_check
      _
    $region15: #{tpu_custom_call.1} parent=1 // pred_check_branch
      %34 = sbr.rel (0) target = $region17
    $region16: #{tpu_custom_call.1} parent=1 // pred_region
      %35 = dma.done [#allocation3], 1024
    $region17: #{tpu_custom_call.1} parent=1 // pred_fallthru
      _
    %36 = sfence
    %v37 = vld [vmem:[#allocation6] sm:$0xff]
    %v38 = vld [vmem:[#allocation6 + $0x8] sm:$0xff]
    %v39 = vld [vmem:[#allocation6 + $0x10] sm:$0xff]
    %v40 = vld [vmem:[#allocation6 + $0x18] sm:$0xff]
    %v41 = vld [vmem:[#allocation6 + $0x20] sm:$0xff]
    %v42 = vld [vmem:[#allocation6 + $0x28] sm:$0xff]
    %v43 = vld [vmem:[#allocation6 + $0x30] sm:$0xff]
    %v44 = vld [vmem:[#allocation6 + $0x38] sm:$0xff]
    %vm45 = vcmask 64512
    %v46 = vsel %vm45, %v37, -inf
    %v47 = vsel %vm45, %v38, -inf
    %v48 = vmax.f32 %v46, %v47
    %v49 = vrot.slane %v48, 4
    %v50 = vmax.f32 %v48, %v49
    %v51 = vrot.slane %v50, 2
    %v52 = vmax.f32 %v50, %v51
    %v53 = vrot.slane %v52, 1
    %v54 = vmax.f32 %v52, %v53
    %v55 = vsel %vm45, %v39, -inf
    %v56 = vsel %vm45, %v40, -inf
    %v57 = vmax.f32 %v55, %v56
    %v58 = vrot.slane %v57, 4
    %v59 = vmax.f32 %v57, %v58
    %v60 = vrot.slane %v59, 2
    %v61 = vmax.f32 %v59, %v60
    %v62 = vrot.slane %v61, 1
    %v63 = vmax.f32 %v61, %v62
    %v64 = vsel %vm45, %v41, -inf
    %v65 = vsel %vm45, %v42, -inf
    %v66 = vmax.f32 %v64, %v65
    %v67 = vrot.slane %v66, 4
    %v68 = vmax.f32 %v66, %v67
    %v69 = vrot.slane %v68, 2
    %v70 = vmax.f32 %v68, %v69
    %v71 = vrot.slane %v70, 1
    %v72 = vmax.f32 %v70, %v71
    %v73 = vsel %vm45, %v43, -inf
    %v74 = vsel %vm45, %v44, -inf
    %v75 = vmax.f32 %v73, %v74
    %v76 = vrot.slane %v75, 4
    %v77 = vmax.f32 %v75, %v76
    %v78 = vrot.slane %v77, 2
    %v79 = vmax.f32 %v77, %v78
    %v80 = vrot.slane %v79, 1
    %v81 = vmax.f32 %v79, %v80
    %v82 = vlaneseq
    %v83 = vshrl.u32 %v82, 7
    %v84 = vadd.s32 %v83, 8
    %vm85 = vcmp.eq.f32.partialorder %v37, %v54
    %vm86 = vcmp.eq.f32.partialorder %v38, %v54
    %vm87 = vcmp.eq.f32.partialorder %v39, %v63
    %vm88 = vcmp.eq.f32.partialorder %v40, %v63
    %vm89 = vcmp.eq.f32.partialorder %v41, %v72
    %vm90 = vcmp.eq.f32.partialorder %v42, %v72
    %vm91 = vcmp.eq.f32.partialorder %v43, %v81
    %vm92 = vcmp.eq.f32.partialorder %v44, %v81
    %v93 = vsel %vm85, %v83, 16
    %v94 = vsel %vm86, %v84, 16
    %v95 = vsel %vm87, %v83, 16
    %v96 = vsel %vm88, %v84, 16
    %v97 = vsel %vm89, %v83, 16
    %v98 = vsel %vm90, %v84, 16
    %v99 = vsel %vm91, %v83, 16
    %v100 = vsel %vm92, %v84, 16
    %v101 = vsel %vm45, %v93, 2147483647
    %v102 = vsel %vm45, %v94, 2147483647
    %vm103 = vcmp.lt.s32.totalorder %v101, %v102
    %v104 = vsel %vm103, %v101, %v102
    %v105 = vrot.slane %v104, 4
    %vm106 = vcmp.lt.s32.totalorder %v104, %v105
    %v107 = vsel %vm106, %v104, %v105
    %v108 = vrot.slane %v107, 2
    %vm109 = vcmp.lt.s32.totalorder %v107, %v108
    %v110 = vsel %vm109, %v107, %v108
    %v111 = vrot.slane %v110, 1
    %vm112 = vcmp.lt.s32.totalorder %v110, %v111
    %v113 = vsel %vm112, %v110, %v111
    %v114 = vsel %vm45, %v95, 2147483647
    %v115 = vsel %vm45, %v96, 2147483647
    %vm116 = vcmp.lt.s32.totalorder %v114, %v115
    %v117 = vsel %vm116, %v114, %v115
    %v118 = vrot.slane %v117, 4
    %vm119 = vcmp.lt.s32.totalorder %v117, %v118
    %v120 = vsel %vm119, %v117, %v118
    %v121 = vrot.slane %v120, 2
    %vm122 = vcmp.lt.s32.totalorder %v120, %v121
    %v123 = vsel %vm122, %v120, %v121
    %v124 = vrot.slane %v123, 1
    %vm125 = vcmp.lt.s32.totalorder %v123, %v124
    %v126 = vsel %vm125, %v123, %v124
    %v127 = vsel %vm45, %v97, 2147483647
    %v128 = vsel %vm45, %v98, 2147483647
    %vm129 = vcmp.lt.s32.totalorder %v127, %v128
    %v130 = vsel %vm129, %v127, %v128
    %v131 = vrot.slane %v130, 4
    %vm132 = vcmp.lt.s32.totalorder %v130, %v131
    %v133 = vsel %vm132, %v130, %v131
    %v134 = vrot.slane %v133, 2
    %vm135 = vcmp.lt.s32.totalorder %v133, %v134
    %v136 = vsel %vm135, %v133, %v134
    %v137 = vrot.slane %v136, 1
    %vm138 = vcmp.lt.s32.totalorder %v136, %v137
    %v139 = vsel %vm138, %v136, %v137
    %v140 = vsel %vm45, %v99, 2147483647
    %v141 = vsel %vm45, %v100, 2147483647
    %vm142 = vcmp.lt.s32.totalorder %v140, %v141
    %v143 = vsel %vm142, %v140, %v141
    %v144 = vrot.slane %v143, 4
    %vm145 = vcmp.lt.s32.totalorder %v143, %v144
    %v146 = vsel %vm145, %v143, %v144
    %v147 = vrot.slane %v146, 2
    %vm148 = vcmp.lt.s32.totalorder %v146, %v147
    %v149 = vsel %vm148, %v146, %v147
    %v150 = vrot.slane %v149, 1
    %vm151 = vcmp.lt.s32.totalorder %v149, %v150
    %v152 = vsel %vm151, %v149, %v150
    %vm153 = vcmp.eq.s32.totalorder %v83, %v113
    %vm154 = vcmp.eq.s32.totalorder %v84, %v113
    %vm155 = vcmp.eq.s32.totalorder %v83, %v126
    %vm156 = vcmp.eq.s32.totalorder %v84, %v126
    %vm157 = vcmp.eq.s32.totalorder %v83, %v139
    %vm158 = vcmp.eq.s32.totalorder %v84, %v139
    %vm159 = vcmp.eq.s32.totalorder %v83, %v152
    %vm160 = vcmp.eq.s32.totalorder %v84, %v152
    %s161 = sld [smem:[#allocation2]]
    %s162 = sld [smem:[#allocation2 + $0x1]]
    %v163 = vstv %s161
    %v164 = vstv %s162
    %v165 = vsel %vm153, %v163, %v164
    %v166 = vsel %vm154, %v163, %v164
    %v167 = vsel %vm155, %v163, %v164
    %v168 = vsel %vm156, %v163, %v164
    %v169 = vsel %vm157, %v163, %v164
    %v170 = vsel %vm158, %v163, %v164
    %v171 = vsel %vm159, %v163, %v164
    %v172 = vsel %vm160, %v163, %v164
    %173 = vst.msk [vmem:[#allocation7] sm:$0xff] %vm45, %v165
    %174 = vst.msk [vmem:[#allocation7 + $0x8] sm:$0xff] %vm45, %v166
    %175 = vst.msk [vmem:[#allocation7 + $0x10] sm:$0xff] %vm45, %v167
    %176 = vst.msk [vmem:[#allocation7 + $0x18] sm:$0xff] %vm45, %v168
    %177 = vst.msk [vmem:[#allocation7 + $0x20] sm:$0xff] %vm45, %v169
    %178 = vst.msk [vmem:[#allocation7 + $0x28] sm:$0xff] %vm45, %v170
    %179 = vst.msk [vmem:[#allocation7 + $0x30] sm:$0xff] %vm45, %v171
    %180 = vst.msk [vmem:[#allocation7 + $0x38] sm:$0xff] %vm45, %v172
    // Predicated region
    $region18: #{tpu_custom_call.1} parent=1 // pred_check
      _
    $region19: #{tpu_custom_call.1} parent=1 // pred_check_branch
      %182 = sbr.rel (0) target = $region21
    $region20: #{tpu_custom_call.1} parent=1 // pred_region
      %s184 = ssub.s32 1024, 1024
      %185 = vsyncadd [#allocation4], %s184
      %s186 = sshll.u32 [#allocation7], 4
      %s187 = int_to_ptr.vmem [resolvable:$true] %s186
      %192 = dma.vmem_to_hbm [thread:$0]  %s187, 1024, %s2, [#allocation4], 128, 128, 8
    $region21: #{tpu_custom_call.1} parent=1 // pred_fallthru
      _
    // Predicated region
    $region22: #{tpu_custom_call.1} parent=1 // pred_check
      _
    $region23: #{tpu_custom_call.1} parent=1 // pred_check_branch
      %194 = sbr.rel (0) target = $region25
    $region24: #{tpu_custom_call.1} parent=1 // pred_region
      %195 = dma.done [#allocation4], 1024
    $region25: #{tpu_custom_call.1} parent=1 // pred_fallthru
      _
    %196 = vsyncpa [#allocation3], 1
    %197 = vsyncpa [#allocation4], 1
    %198 = vsyncpa [#allocation5], 1

</llo_original>
